<compile_context>
chip_gen: v5e
topology: v5e:2x2
jax: 0.10.0
libtpu: 0.0.40
codegen_flags: <defaults>
</compile_context>

<pallas_src>
import jax
import jax.numpy as jnp
from jax.experimental import pallas as pl
from jax.experimental.pallas import tpu as pltpu

_LANE = 128
_SUBLANE = 8
_TARGET_BLOCK_BYTES = 2 * 1024 * 1024    # per-input f32 block budget (all gens)
_VMEM_LIMIT_BYTES = 32 * 1024 * 1024     # <= scoped default on v7x, safe on v5e/v6e


def _round_up(x: int, m: int) -> int:
    return (x + m - 1) // m * m


def _choose_tiles(B: int, L: int):
    """Pick (tm, tl) so one f32 block (lane-padded) stays within the budget."""
    max_elems = _TARGET_BLOCK_BYTES // 4          # f32 elements per input block
    lp = _round_up(L, _LANE)                      # VMEM lane padding of a row
    row_cap = B if B < _SUBLANE else (B // _SUBLANE) * _SUBLANE

    if _SUBLANE * lp <= max_elems:
        # Full label rows fit comfortably -> tile over the batch dim only.
        tl = L
        tm = max(_SUBLANE, (max_elems // lp) // _SUBLANE * _SUBLANE)
        tm = min(tm, row_cap)
    else:
        # Very wide label dim: also tile L in 128-lane multiples so tm can
        # stay >= ~256 and the sublane-group reduce stays cheap.
        tm = min(256, row_cap)
        tl = (max_elems // max(tm, _SUBLANE)) // _LANE * _LANE
        tl = max(_LANE, min(tl, (L // _LANE) * _LANE))
    return tm, tl


def _make_bce_kernel(tm, tl, B, L, out_cols, need_row_mask, need_col_mask):
    sub = _SUBLANE if tm % _SUBLANE == 0 else tm   # tm < 8 only when B < 8

    def kernel(logits_ref, target_ref, out_ref):
        i = pl.program_id(0)
        j = pl.program_id(1)

        x = logits_ref[...].astype(jnp.float32)
        t = target_ref[...].astype(jnp.float32)

        # Fused BCE-with-logits (sigmoid folded in), numerically stable.
        # Clipping x to [-100, 100] first reproduces torch.nn.BCELoss's
        # per-term -100 clamp (differences only of order exp(-100)).
        xc = jnp.clip(x, -100.0, 100.0)
        loss = (jnp.maximum(xc, 0.0) - xc * t
                + jnp.log(1.0 + jnp.exp(-jnp.abs(xc))))

        # Mask ragged edge tiles with a select so out-of-bounds garbage / NaN
        # contributes exactly 0 to the partial sums.
        if need_row_mask or need_col_mask:
            valid = None
            if need_row_mask:
                rows = jax.lax.broadcasted_iota(jnp.int32, (tm, tl), 0) + i * tm
                valid = rows < B
            if need_col_mask:
                cols = jax.lax.broadcasted_iota(jnp.int32, (tm, tl), 1) + j * tl
                cmask = cols < L
                valid = cmask if valid is None else valid & cmask
            loss = jnp.where(valid, loss, 0.0)

        # (tm, tl) -> (8, tl): cross-vreg VPU adds over 8-row sublane groups
        # (the reshape is a pure tile-row re-index, no relayout expected).
        if tm % _SUBLANE == 0:
            part = jnp.sum(loss.reshape(tm // _SUBLANE, _SUBLANE, tl), axis=0)
        else:
            part = loss
        # Fold the lane axis down to 128 lanes when L is tiled so the partial
        # writeback stays negligible even for small tm.
        if out_cols != tl:
            part = jnp.sum(part.reshape(sub, tl // out_cols, out_cols), axis=1)
        out_ref[...] = part

    return kernel


def multi_label_bce_loss(logits: jax.Array, target: jax.Array) -> jax.Array:
    """Equivalent of MultiLabelBinaryCrossEntropyLoss.forward (mean reduction)."""
    assert logits.shape == target.shape and logits.ndim == 2
    B, L = logits.shape

    tm, tl = _choose_tiles(B, L)
    num_row_tiles = pl.cdiv(B, tm)
    num_l_tiles = pl.cdiv(L, tl)
    need_row_mask = (B % tm) != 0
    need_col_mask = (L % tl) != 0
    out_cols = _LANE if num_l_tiles > 1 else tl
    sub = _SUBLANE if tm % _SUBLANE == 0 else tm

    kernel = _make_bce_kernel(tm, tl, B, L, out_cols, need_row_mask, need_col_mask)

    partials = pl.pallas_call(
        kernel,
        out_shape=jax.ShapeDtypeStruct(
            (num_row_tiles * sub, num_l_tiles * out_cols), jnp.float32),
        grid_spec=pltpu.PrefetchScalarGridSpec(
            num_scalar_prefetch=0,
            grid=(num_row_tiles, num_l_tiles),
            in_specs=[
                pl.BlockSpec((tm, tl), lambda i, j: (i, j)),
                pl.BlockSpec((tm, tl), lambda i, j: (i, j)),
            ],
            out_specs=pl.BlockSpec((sub, out_cols), lambda i, j: (i, j)),
        ),
        compiler_params=pltpu.CompilerParams(
            dimension_semantics=("parallel", "parallel"),
            vmem_limit_bytes=_VMEM_LIMIT_BYTES,
        ),
    )(logits, target)

    # Tiny final reduction + mean (over the true B*L elements) in plain JAX.
    return jnp.sum(partials) / jnp.float32(B * L)


if __name__ == "__main__":
    key = jax.random.PRNGKey(0)
    k1, k2 = jax.random.split(key)

    # Small multi-label batch; B and L deliberately not (8,128)-aligned so the
    # ragged-row masking path (no padding in the wrapper) is exercised.
    B, L = 20, 37
    logits = jax.random.normal(k1, (B, L), dtype=jnp.float32)
    target = (jax.random.uniform(k2, (B, L)) > 0.5).astype(jnp.float32)

    loss = multi_label_bce_loss(logits, target)
    loss = jax.block_until_ready(loss)

    # Reference: plain-JAX sigmoid + BCELoss (torch semantics, incl. -100 clamp).
    p = jax.nn.sigmoid(logits)
    ref = jnp.mean(
        -(
            target * jnp.maximum(jnp.log(p), -100.0)
            + (1.0 - target) * jnp.maximum(jnp.log(1.0 - p), -100.0)
        )
    )
    assert jnp.allclose(loss, ref, rtol=1e-5, atol=1e-6), (loss, ref)

    print("KERNEL_OK")
</pallas_src>

<mosaic_0001>
module attributes {stable_mosaic.version = 11 : i64} {
  func.func @kernel(%arg0: i32, %arg1: i32, %arg2: memref<16x37xf32, #tpu.memory_space<vmem>>, %arg3: memref<16x37xf32, #tpu.memory_space<vmem>>, %arg4: memref<8x37xf32, #tpu.memory_space<vmem>>) attributes {dimension_semantics = [#tpu.dimension_semantics<parallel>, #tpu.dimension_semantics<parallel>], iteration_bounds = array<i64: 2, 1>, scalar_prefetch = 0 : i64, scratch_operands = 0 : i64, tpu.core_type = #tpu.core_type<tc>, window_params = [{transform_indices = @transform_0, window_bounds = array<i64: 16, 37>}, {transform_indices = @transform_1, window_bounds = array<i64: 16, 37>}, {transform_indices = @transform_2, window_bounds = array<i64: 8, 37>}]} {
    %c0 = arith.constant 0 : index
    %c0_0 = arith.constant 0 : index
    %0 = vector.load %arg2[%c0, %c0_0] : memref<16x37xf32, #tpu.memory_space<vmem>>, vector<16x37xf32>
    %c0_1 = arith.constant 0 : index
    %c0_2 = arith.constant 0 : index
    %1 = vector.load %arg3[%c0_1, %c0_2] : memref<16x37xf32, #tpu.memory_space<vmem>>, vector<16x37xf32>
    %cst = arith.constant -1.000000e+02 : f32
    %cst_3 = arith.constant 1.000000e+02 : f32
    %2 = vector.broadcast %cst : f32 to vector<16x37xf32>
    %3 = arith.maximumf %2, %0 : vector<16x37xf32>
    %4 = vector.broadcast %cst_3 : f32 to vector<16x37xf32>
    %5 = arith.minimumf %4, %3 : vector<16x37xf32>
    %cst_4 = arith.constant 0.000000e+00 : f32
    %6 = vector.broadcast %cst_4 : f32 to vector<16x37xf32>
    %7 = arith.maximumf %5, %6 : vector<16x37xf32>
    %8 = arith.mulf %5, %1 : vector<16x37xf32>
    %9 = arith.subf %7, %8 : vector<16x37xf32>
    %10 = math.absf %5 : vector<16x37xf32>
    %cst_5 = arith.constant 0.000000e+00 : f32
    %11 = vector.broadcast %cst_5 : f32 to vector<16x37xf32>
    %12 = arith.subf %11, %10 : vector<16x37xf32>
    %13 = math.exp %12 : vector<16x37xf32>
    %cst_6 = arith.constant 1.000000e+00 : f32
    %14 = vector.broadcast %cst_6 : f32 to vector<16x37xf32>
    %15 = arith.addf %14, %13 : vector<16x37xf32>
    %16 = math.log %15 : vector<16x37xf32>
    %17 = arith.addf %9, %16 : vector<16x37xf32>
    %18 = tpu.iota {dimensions = array<i32: 0>} : vector<16x37xi32>
    %c16_i32 = arith.constant 16 : i32
    %19 = arith.muli %arg0, %c16_i32 : i32
    %20 = vector.broadcast %19 : i32 to vector<16x37xi32>
    %21 = arith.addi %18, %20 : vector<16x37xi32>
    %c20_i32 = arith.constant 20 : i32
    %22 = vector.broadcast %c20_i32 : i32 to vector<16x37xi32>
    %23 = arith.cmpi slt, %21, %22 : vector<16x37xi32>
    %cst_7 = arith.constant 0.000000e+00 : f32
    %24 = vector.broadcast %cst_7 : f32 to vector<16x37xf32>
    %25 = arith.select %23, %17, %24 : vector<16x37xi1>, vector<16x37xf32>
    %26 = vector.shape_cast %25 : vector<16x37xf32> to vector<2x8x37xf32>
    %cst_8 = arith.constant dense<0.000000e+00> : vector<8x37xf32>
    %27 = vector.multi_reduction <add>, %26, %cst_8 [0] : vector<2x8x37xf32> to vector<8x37xf32>
    %c0_9 = arith.constant 0 : index
    %c0_10 = arith.constant 0 : index
    %28 = vector.load %arg4[%c0_9, %c0_10] : memref<8x37xf32, #tpu.memory_space<vmem>>, vector<8x37xf32>
    tpu.vector_store %arg4[%c0_9, %c0_10], %27 {strides = array<i32>} : memref<8x37xf32, #tpu.memory_space<vmem>>, vector<8x37xf32>,
    return
  }
  func.func @transform_0(%arg0: i32, %arg1: i32) -> (i32, i32) {
    %c0_i32 = arith.constant 0 : i32
    return %arg0, %arg1 : i32, i32
  }
  func.func @transform_1(%arg0: i32, %arg1: i32) -> (i32, i32) {
    %c0_i32 = arith.constant 0 : i32
    return %arg0, %arg1 : i32, i32
  }
  func.func @transform_2(%arg0: i32, %arg1: i32) -> (i32, i32) {
    %c0_i32 = arith.constant 0 : i32
    return %arg0, %arg1 : i32, i32
  }
}

</mosaic_0001>

<llo_original>
// kernel: tpu_custom_call.1
$region0: #{tpu_custom_call.1}
  #allocation0 [shape = 'u32[]', space=smem, size = 0x4, offset = 0x4, fixed_abs, tag = 'smem constant byte address 0x4 - core index']
  #allocation1 [shape = 'u32[72,128]{1,0:T(1,128)}', space=vmem, size = 0x9000, scoped, tag = 'internal scratch']
  %s0 = inlined_call_operand.hbm [shape: f32[20,37], index: 0, kind: input, shape index: {}]
  %s1 = inlined_call_operand.hbm [shape: f32[20,37], index: 1, kind: input, shape index: {}]
  %s2 = inlined_call_operand.hbm [shape: f32[16,37], index: 2, kind: output, shape index: {}]
  %s3 = sld [smem:[#allocation0]]
  $region49: #{tpu_custom_call.1} parent=0
    _
  %s5 = ssub.s32 1, %s3
  %s6 = scalar_select 0, %s5, %s3
  $region1: #{tpu_custom_call.1} parent=0
    #allocation2 [shape = 'u8[16384]{0}', space=vmem, size = 0x4000, scoped, tag = 'input window, operand 0']
    #allocation3 [shape = 's32[2]{0}', space=sflag, size = 0x8, scoped, tag = 'scoped memory for tpu_custom_call.1']
    #allocation4 [shape = 's32[2]{0}', space=sflag, size = 0x8, scoped, tag = 'scoped memory for tpu_custom_call.1']
    #allocation5 [shape = 'u8[16384]{0}', space=vmem, size = 0x4000, scoped, tag = 'input window, operand 1']
    #allocation6 [shape = 's32[2]{0}', space=sflag, size = 0x8, scoped, tag = 'scoped memory for tpu_custom_call.1']
    #allocation7 [shape = 'u8[8192]{0}', space=vmem, size = 0x2000, scoped, tag = 'output window, operand 0']
    %7 = vsyncpa [#allocation3], 0
    %s8 = scalar_lea.sflag [#allocation3], 1
    %9 = vsyncpa %s8, 0
    %10 = vsyncpa [#allocation6], 0
    %s11 = scalar_lea.sflag [#allocation6], 1
    %12 = vsyncpa %s11, 0
    %13 = vsyncpa [#allocation4], 0
    %s14 = scalar_lea.sflag [#allocation4], 1
    %15 = vsyncpa %s14, 0
    loop: start=0, step=1, limit=4
    $region2: #{tpu_custom_call.1} parent=1 // loop_pre_header
      _
    $region3: #{tpu_custom_call.1} parent=1 // loop_header
      %s17 = sphi 0, %s21
      %p18 = scmp.ge.s32.totalorder %s17, 4
      %s24 = sphi 0, %s36
      %s25 = sphi 0, %s32
      %s26 = sphi 0, %s24
      %s27 = sphi 0, %s25
      %s28 = sphi 0, %s26
      %s29 = sphi 0, %s27
      %s41 = sphi 0, %s43
      %s44 = sphi 0, %s41
      %s45 = sphi 0, %s44
      %s61 = sphi 0, %s45
      %s69 = sphi 0, %s71
      %s72 = sphi 0, %s69
      %s73 = sphi 0, %s72
      %s89 = sphi 0, %s73
      %s97 = sphi 0, %s99
      %s100 = sphi 0, %s97
      %s101 = sphi 0, %s100
      %s117 = sphi 0, %s101
    $region4: #{tpu_custom_call.1} parent=1 // loop_header_branch
      %20 = sbr.rel (%p18) target = $region8
    $region5: #{tpu_custom_call.1} parent=1 // loop_body
      %s22 = ssub.s32 %s17, 1
      %s23 = ssub.s32 %s17, 2
      %s30 = sadd.s32 1, %s25
      %p31 = scmp.ge.s32.totalorder %s30, 1
      %s32 = scalar_select %p31, 0, %s30
      %s33 = sadd.s32 1, %s24
      %s34 = scalar_select %p31, %s33, %s24
      %p35 = scmp.ge.s32.totalorder %s34, 2
      %s36 = scalar_select %p35, 0, %s34
      %s37 = ssub.s32 %s24, %s36
      %s38 = ssub.s32 %s25, %s32
      %s39 = sor.u32 %s37, %s38
      %p40 = scmp.eq.s32.totalorder %s39, 0
      %s42 = sadd.s32 %s41, 1
      %s43 = scalar_select %p40, %s41, %s42
      %p46 = pneg %p40
      %p47 = scmp.eq.s32.totalorder %s17, 1
      %p48 = por %p46, %p47
      %p49 = scmp.ne.s32.totalorder %s41, %s44
      %p50 = scmp.eq.s32.totalorder %s17, 0
      %p51 = por %p49, %p50
      %p52 = scmp.ne.s32.totalorder %s41, %s44
      %p53 = scmp.eq.s32.totalorder %s22, 1
      %p54 = por %p52, %p53
      %p55 = scmp.ne.s32.totalorder %s44, %s45
      %p56 = scmp.eq.s32.totalorder %s22, 0
      %p57 = por %p55, %p56
      %p58 = scmp.ne.s32.totalorder %s44, %s45
      %p59 = scmp.eq.s32.totalorder %s23, 1
      %p60 = por %p58, %p59
      %p62 = scmp.ne.s32.totalorder %s45, %s61
      %p63 = scmp.eq.s32.totalorder %s23, 0
      %p64 = por %p62, %p63
      %s65 = ssub.s32 %s24, %s36
      %s66 = ssub.s32 %s25, %s32
      %s67 = sor.u32 %s65, %s66
      %p68 = scmp.eq.s32.totalorder %s67, 0
      %s70 = sadd.s32 %s69, 1
      %s71 = scalar_select %p68, %s69, %s70
      %p74 = pneg %p68
      %p75 = scmp.eq.s32.totalorder %s17, 1
      %p76 = por %p74, %p75
      %p77 = scmp.ne.s32.totalorder %s69, %s72
      %p78 = scmp.eq.s32.totalorder %s17, 0
      %p79 = por %p77, %p78
      %p80 = scmp.ne.s32.totalorder %s69, %s72
      %p81 = scmp.eq.s32.totalorder %s22, 1
      %p82 = por %p80, %p81
      %p83 = scmp.ne.s32.totalorder %s72, %s73
      %p84 = scmp.eq.s32.totalorder %s22, 0
      %p85 = por %p83, %p84
      %p86 = scmp.ne.s32.totalorder %s72, %s73
      %p87 = scmp.eq.s32.totalorder %s23, 1
      %p88 = por %p86, %p87
      %p90 = scmp.ne.s32.totalorder %s73, %s89
      %p91 = scmp.eq.s32.totalorder %s23, 0
      %p92 = por %p90, %p91
      %s93 = ssub.s32 %s24, %s36
      %s94 = ssub.s32 %s25, %s32
      %s95 = sor.u32 %s93, %s94
      %p96 = scmp.eq.s32.totalorder %s95, 0
      %s98 = sadd.s32 %s97, 1
      %s99 = scalar_select %p96, %s97, %s98
      %p102 = pneg %p96
      %p103 = scmp.eq.s32.totalorder %s17, 1
      %p104 = por %p102, %p103
      %p105 = scmp.ne.s32.totalorder %s97, %s100
      %p106 = scmp.eq.s32.totalorder %s17, 0
      %p107 = por %p105, %p106
      %p108 = scmp.ne.s32.totalorder %s97, %s100
      %p109 = scmp.eq.s32.totalorder %s22, 1
      %p110 = por %p108, %p109
      %p111 = scmp.ne.s32.totalorder %s100, %s101
      %p112 = scmp.eq.s32.totalorder %s22, 0
      %p113 = por %p111, %p112
      %p114 = scmp.ne.s32.totalorder %s100, %s101
      %p115 = scmp.eq.s32.totalorder %s23, 1
      %p116 = por %p114, %p115
      %p118 = scmp.ne.s32.totalorder %s101, %s117
      %p119 = scmp.eq.s32.totalorder %s23, 0
      %p120 = por %p118, %p119
      %p121 = scmp.le.s32.totalorder 1, %s17
      %p122 = scmp.lt.s32.totalorder %s17, 3
      %p123 = pnand %p121, %p122
      %p124 = pneg %p123
      // Predicated region
      $region9: #{tpu_custom_call.1} parent=5 // pred_check
        _
      $region10: #{tpu_custom_call.1} parent=5 // pred_check_branch
        %126 = sbr.rel (%p123) target = $region12
      $region11: #{tpu_custom_call.1} parent=5 // pred_region
        %s127 = ssub.s32 %s17, 1
      $region12: #{tpu_custom_call.1} parent=5 // pred_fallthru
        _
      %p128 = scmp.lt.s32.totalorder %s17, 2
      // Predicated region
      $region13: #{tpu_custom_call.1} parent=5 // pred_check
        %p129 = pneg %p128
      $region14: #{tpu_custom_call.1} parent=5 // pred_check_branch
        %131 = sbr.rel (%p129) target = $region16
      $region15: #{tpu_custom_call.1} parent=5 // pred_region
        // Predicated region
        $region17: #{tpu_custom_call.1} parent=15 // pred_check
          %p132 = pneg %p51
        $region18: #{tpu_custom_call.1} parent=15 // pred_check_branch
          %134 = sbr.rel (%p132) target = $region20
        $region19: #{tpu_custom_call.1} parent=15 // pred_region
          %s135 = sand.u32 %s41, 1
          %s136 = scalar_lea.sflag [#allocation3], %s135
          %s137 = sand.u32 %s41, 1
          %s138 = smul.addr %s137, 16
          %s139 = scalar_lea.vmem [#allocation2], %s138
          %s140 = smul.u32 2, %s24
          %s141 = ssub.s32 3, %s140
          %p142 = scmp.lt.s32.totalorder %s141, 2
          %s143 = scalar_select %p142, %s141, 2
          %s144 = smul.u32 8, %s143
          %s145 = ssub.s32 16, %s144
          %s146 = sshll.u32 %s145, 4
          %147 = vsyncadd %s136, %s146
          %p148 = scmp.ne.s32.totalorder 0, %s144
          %s149 = sadd.s32 %s25, %s140
          %s150 = smul.addr %s149, 8
          %s151 = scalar_lea.hbm %s0, %s150
          %s152 = smul.u32 8, %s143
          %s153 = sshll.u32 %s151, 4
          %s154 = int_to_ptr.hbm [resolvable:$true] %s153
          %s155 = sshll.u32 %s139, 4
          %s156 = int_to_ptr.vmem [resolvable:$true] %s155
          %s157 = sshll.u32 %s152, 4
          %161 = dma.hbm_to_vmem [thread:$0]  (%p148), %s154, %s157, %s156, %s136, 128, 128, 8
        $region20: #{tpu_custom_call.1} parent=15 // pred_fallthru
          _
        // Predicated region
        $region21: #{tpu_custom_call.1} parent=15 // pred_check
          %p162 = pneg %p79
        $region22: #{tpu_custom_call.1} parent=15 // pred_check_branch
          %164 = sbr.rel (%p162) target = $region24
        $region23: #{tpu_custom_call.1} parent=15 // pred_region
          %s165 = sand.u32 %s69, 1
          %s166 = scalar_lea.sflag [#allocation6], %s165
          %s167 = sand.u32 %s69, 1
          %s168 = smul.addr %s167, 16
          %s169 = scalar_lea.vmem [#allocation5], %s168
          %s170 = smul.u32 2, %s24
          %s171 = ssub.s32 3, %s170
          %p172 = scmp.lt.s32.totalorder %s171, 2
          %s173 = scalar_select %p172, %s171, 2
          %s174 = smul.u32 8, %s173
          %s175 = ssub.s32 16, %s174
          %s176 = sshll.u32 %s175, 4
          %177 = vsyncadd %s166, %s176
          %p178 = scmp.ne.s32.totalorder 0, %s174
          %s179 = sadd.s32 %s25, %s170
          %s180 = smul.addr %s179, 8
          %s181 = scalar_lea.hbm %s1, %s180
          %s182 = smul.u32 8, %s173
          %s183 = sshll.u32 %s181, 4
          %s184 = int_to_ptr.hbm [resolvable:$true] %s183
          %s185 = sshll.u32 %s169, 4
          %s186 = int_to_ptr.vmem [resolvable:$true] %s185
          %s187 = sshll.u32 %s182, 4
          %191 = dma.hbm_to_vmem [thread:$0]  (%p178), %s184, %s187, %s186, %s166, 128, 128, 8
        $region24: #{tpu_custom_call.1} parent=15 // pred_fallthru
          _
      $region16: #{tpu_custom_call.1} parent=5 // pred_fallthru
        _
      %p192 = scmp.le.s32.totalorder 1, %s17
      %p193 = scmp.lt.s32.totalorder %s17, 3
      %p194 = pnand %p192, %p193
      %p195 = pneg %p194
      // Predicated region
      $region25: #{tpu_custom_call.1} parent=5 // pred_check
        _
      $region26: #{tpu_custom_call.1} parent=5 // pred_check_branch
        %197 = sbr.rel (%p194) target = $region28
      $region27: #{tpu_custom_call.1} parent=5 // pred_region
        %s198 = ssub.s32 %s17, 1
        %s199 = sand.u32 %s44, 1
        %s200 = scalar_lea.sflag [#allocation3], %s199
        %s201 = sand.u32 %s44, 1
        %s202 = smul.addr %s201, 16
        %s203 = scalar_lea.vmem [#allocation2], %s202
        // Predicated region
        $region29: #{tpu_custom_call.1} parent=27 // pred_check
          %p204 = pneg %p57
        $region30: #{tpu_custom_call.1} parent=27 // pred_check_branch
          %206 = sbr.rel (%p204) target = $region32
        $region31: #{tpu_custom_call.1} parent=27 // pred_region
          %208 = dma.done %s200, 256
        $region32: #{tpu_custom_call.1} parent=27 // pred_fallthru
          _
        %s209 = sand.u32 %s72, 1
        %s210 = scalar_lea.sflag [#allocation6], %s209
        %s211 = sand.u32 %s72, 1
        %s212 = smul.addr %s211, 16
        %s213 = scalar_lea.vmem [#allocation5], %s212
        // Predicated region
        $region33: #{tpu_custom_call.1} parent=27 // pred_check
          %p214 = pneg %p85
        $region34: #{tpu_custom_call.1} parent=27 // pred_check_branch
          %216 = sbr.rel (%p214) target = $region36
        $region35: #{tpu_custom_call.1} parent=27 // pred_region
          %218 = dma.done %s210, 256
        $region36: #{tpu_custom_call.1} parent=27 // pred_fallthru
          _
        %s219 = sand.u32 %s44, 1
        %s220 = scalar_lea.sflag [#allocation3], %s219
        %s221 = sand.u32 %s44, 1
        %s222 = smul.addr %s221, 16
        %s223 = scalar_lea.vmem [#allocation2], %s222
        %p224 = pneg %p57
        %p225 = pneg %p54
        %s226 = sand.u32 %s72, 1
        %s227 = scalar_lea.sflag [#allocation6], %s226
        %s228 = sand.u32 %s72, 1
        %s229 = smul.addr %s228, 16
        %s230 = scalar_lea.vmem [#allocation5], %s229
        %p231 = pneg %p85
        %p232 = pneg %p82
        %p233 = pneg %p113
        %p234 = pneg %p110
        %s235 = sand.u32 %s100, 1
        %s236 = scalar_lea.sflag [#allocation4], %s235
        %s237 = sand.u32 %s100, 1
        %s238 = smul.addr %s237, 8
        %s239 = scalar_lea.vmem [#allocation7], %s238
        %s240 = smul.u32 2, %s26
        %s241 = ssub.s32 3, %s240
        %p242 = scmp.lt.s32.totalorder %s241, 2
        %s243 = scalar_select %p242, %s241, 2
        %s244 = smul.u32 8, %s243
        %s245 = smul.u32 2, %s26
        %s246 = ssub.s32 3, %s245
        %p247 = scmp.lt.s32.totalorder %s246, 2
        %s248 = scalar_select %p247, %s246, 2
        %s249 = smul.u32 8, %s248
        %v250 = vld [vmem:[%s203] sm:$0xff]
        %v251 = vld [vmem:[%s203 + $0x8] sm:$0xff]
        %v252 = vld [vmem:[%s213] sm:$0xff]
        %v253 = vld [vmem:[%s213 + $0x8] sm:$0xff]
        %v254 = vmax.f32 %v250, -100.0
        %v255 = vmax.f32 %v251, -100.0
        %v256 = vmin.f32 %v254, 100.0
        %v257 = vmin.f32 %v255, 100.0
        %v258 = vmax.f32 %v256, 0.0
        %v259 = vmax.f32 %v257, 0.0
        %v260 = vmul.f32 %v256, %v252
        %v261 = vmul.f32 %v257, %v253
        %v262 = vsub.f32 %v258, %v260
        %v263 = vsub.f32 %v259, %v261
        %v264 = vand.u32 2147483647, %v256
        %v265 = vand.u32 2147483647, %v257
        %v266 = vsub.f32 0.0, %v264
        %v267 = vsub.f32 0.0, %v265
        %v268 = vmul.f32 %v266, 1.442695
        %v269 = vpow.pop %v268
        %v270 = vmul.f32 %v267, 1.442695
        %v271 = vpow.pop %v270
        %v272 = vadd.f32 %v269, 1.0
        %v273 = vadd.f32 %v271, 1.0
        %v274 = vlog2.pop %v272
        %v275 = vmul.f32 %v274, 0.6931472
        %v276 = vlog2.pop %v273
        %v277 = vmul.f32 %v276, 0.6931472
        %v278 = vadd.f32 %v262, %v275
        %v279 = vadd.f32 %v263, %v277
        %v280 = vlaneseq
        %v281 = vshrl.u32 %v280, 7
        %v282 = vadd.s32 %v281, 8
        %s283 = smul.u32 %s26, 16
        %v284 = vstv %s283
        %v285 = vadd.s32 %v281, %v284
        %v286 = vadd.s32 %v282, %v284
        %vm287 = vcmp.lt.s32.totalorder %v285, 20
        %vm288 = vcmp.lt.s32.totalorder %v286, 20
        %v289 = vsel %vm287, %v278, 0.0
        %v290 = vsel %vm288, %v279, 0.0
        %vm291 = vcmask 302080
        %v292 = vsel %vm291, %v289, 0.0
        %v293 = vsel %vm291, %v290, 0.0
        %v294 = vadd.f32 %v292, %v293
        %295 = vst.msk [vmem:[%s239] sm:$0xff] %vm291, %v294
        %s296 = sand.u32 %s100, 1
        %s297 = scalar_lea.sflag [#allocation4], %s296
        %s298 = sand.u32 %s100, 1
        %s299 = smul.addr %s298, 8
        %s300 = scalar_lea.vmem [#allocation7], %s299
        // Predicated region
        $region37: #{tpu_custom_call.1} parent=27 // pred_check
          %p301 = pneg %p110
        $region38: #{tpu_custom_call.1} parent=27 // pred_check_branch
          %303 = sbr.rel (%p301) target = $region40
        $region39: #{tpu_custom_call.1} parent=27 // pred_region
          %305 = vsyncadd %s297, 0
          %s306 = sadd.s32 %s27, %s26
          %s307 = smul.addr %s306, 8
          %s308 = scalar_lea.hbm %s2, %s307
          %s310 = sshll.u32 %s300, 4
          %s311 = int_to_ptr.vmem [resolvable:$true] %s310
          %s312 = sshll.u32 %s308, 4
          %s313 = int_to_ptr.hbm [resolvable:$true] %s312
          %315 = dma.vmem_to_hbm [thread:$0]  %s311, 128, %s313, %s297
        $region40: #{tpu_custom_call.1} parent=27 // pred_fallthru
          _
      $region28: #{tpu_custom_call.1} parent=5 // pred_fallthru
        _
      %p316 = scmp.le.s32.totalorder 2, %s17
      // Predicated region
      $region41: #{tpu_custom_call.1} parent=5 // pred_check
        %p317 = pneg %p316
      $region42: #{tpu_custom_call.1} parent=5 // pred_check_branch
        %319 = sbr.rel (%p317) target = $region44
      $region43: #{tpu_custom_call.1} parent=5 // pred_region
        %s320 = ssub.s32 %s17, 2
        // Predicated region
        $region45: #{tpu_custom_call.1} parent=43 // pred_check
          %p321 = pneg %p116
        $region46: #{tpu_custom_call.1} parent=43 // pred_check_branch
          %323 = sbr.rel (%p321) target = $region48
        $region47: #{tpu_custom_call.1} parent=43 // pred_region
          %s324 = sand.u32 %s101, 1
          %s325 = scalar_lea.sflag [#allocation4], %s324
          %s326 = sand.u32 %s101, 1
          %s327 = smul.addr %s326, 8
          %s328 = scalar_lea.vmem [#allocation7], %s327
          %330 = dma.done %s325, 128
        $region48: #{tpu_custom_call.1} parent=43 // pred_fallthru
          _
      $region44: #{tpu_custom_call.1} parent=5 // pred_fallthru
        _
    $region6: #{tpu_custom_call.1} parent=1 // loop_footer
      %s21 = sadd.s32 1, %s17
    $region7: #{tpu_custom_call.1} parent=1 // loop_footer_branch
      %16 = sbr.rel target = $region3
    $region8: #{tpu_custom_call.1} parent=1 // loop_exit
      _
    %331 = vsyncpa [#allocation3], 1
    %s332 = scalar_lea.sflag [#allocation3], 1
    %333 = vsyncpa %s332, 1
    %334 = vsyncpa [#allocation6], 1
    %s335 = scalar_lea.sflag [#allocation6], 1
    %336 = vsyncpa %s335, 1
    %337 = vsyncpa [#allocation4], 1
    %s338 = scalar_lea.sflag [#allocation4], 1
    %339 = vsyncpa %s338, 1

</llo_original>
